<compile_context>
chip_gen: v7x
topology: tpu7x:2x2x1
jax: 0.10.0
libtpu: 0.0.40
codegen_flags: <defaults>
</compile_context>

<pallas_src>
import numpy as np
import jax
import jax.numpy as jnp
from jax.experimental import pallas as pl
from jax.experimental.pallas import tpu as pltpu


def _round_up(a, b):
    return (a + b - 1) // b * b


def _make_kernel(gridsize, lam0, delta, operand_dtype):
    """gridsize / lambda parameters are compile-time constants (shape-defining)."""
    G = int(gridsize)
    lam0 = float(lam0)
    delta = float(delta)

    def kernel(x_ref, w_ref, b_ref, o_ref):
        x = x_ref[...]                                   # (TN, I) float32
        # Geometric recurrence over lambda_g = lam0 + g*delta:
        #   exp(s*lambda_g*x) = exp(s*lam0*x) * exp(s*delta*x)**g
        # -> only 4 EUP exps per tile; the rest are VPU multiplies (f32 for
        # accuracy). Each block is cast to the MXU operand dtype immediately
        # so the concatenated E tile is assembled in operand precision.
        e_neg = jnp.exp(-lam0 * x)
        e_pos = jnp.exp(lam0 * x)
        neg_blocks = [e_neg.astype(operand_dtype)]
        pos_blocks = [e_pos.astype(operand_dtype)]
        if G > 1:
            r_neg = jnp.exp(-delta * x)
            r_pos = jnp.exp(delta * x)
            for _ in range(1, G):
                e_neg = e_neg * r_neg
                e_pos = e_pos * r_pos
                neg_blocks.append(e_neg.astype(operand_dtype))
                pos_blocks.append(e_pos.astype(operand_dtype))
        # (TN, 2*G*I): column order (sign, g, i) matches the packed weights.
        E = jnp.concatenate(neg_blocks + pos_blocks, axis=-1)
        # Single fused MXU matmul, K = 2*G*I, f32 accumulation; bias folded
        # into the f32 result before the store.
        acc = jnp.dot(E, w_ref[...], preferred_element_type=jnp.float32)
        o_ref[...] = acc + b_ref[...]                    # bias broadcast (1, O)

    return kernel


def naive_laplace_kan_forward(x, gridsize_param, laplacecoeffs, bias=None, *,
                              block_rows=512, operand_dtype=jnp.bfloat16):
    """Pallas implementation of NaiveLaplaceKANLayer.forward."""
    # gridsize = round(clamp(gridsize_param, min=1)); it determines array
    # shapes so it must be static in JAX (read as a concrete Python int here).
    gridsize = int(max(1, round(float(gridsize_param))))
    outdim, inputdim = laplacecoeffs.shape[1], laplacecoeffs.shape[2]
    assert x.shape[-1] == inputdim
    outshape = x.shape[:-1] + (outdim,)

    x2 = x.reshape(-1, inputdim).astype(jnp.float32)     # (N, I)
    N = x2.shape[0]

    # Row tile: large (default 512) for pipelining efficiency; pad N up to a
    # multiple of TN (padded rows are computed and sliced off afterwards).
    TN = _round_up(min(int(block_rows), N), 8)
    Np = _round_up(N, TN)
    if Np != N:
        x2 = jnp.pad(x2, ((0, Np - N), (0, 0)))

    # lambda_g = linspace(0.1, 1.0, G) = 0.1 + g * Delta.
    lam0 = 0.1
    delta = (1.0 - 0.1) / (gridsize - 1) if gridsize > 1 else 0.0

    # Pack (2, O, I, G) -> single 2-D weight (2*G*I, O); row = (s*G + g)*I + i.
    K = 2 * gridsize * inputdim
    W = jnp.transpose(laplacecoeffs[..., :gridsize], (0, 3, 2, 1))
    W = W.reshape(K, outdim).astype(operand_dtype)
    b = (bias if bias is not None else jnp.zeros((1, outdim), jnp.float32))
    b = b.reshape(1, outdim).astype(jnp.float32)

    # VMEM budget from actual buffer arithmetic (double-buffered x/out tiles,
    # weights/bias, recurrence temporaries and the operand-dtype E tile),
    # capped at 64 MiB (v7x physical VMEM per TC).
    op_bytes = jnp.dtype(operand_dtype).itemsize
    est = (2 * TN * inputdim * 4            # x tile, double-buffered
           + 2 * TN * outdim * 4            # out tile, double-buffered
           + 2 * K * outdim * op_bytes      # packed weights (constant index)
           + 4 * max(outdim, 128) * 4       # bias (padded sublane tile)
           + 6 * TN * inputdim * 4          # f32 recurrence temporaries
           + 2 * TN * K * op_bytes)         # E blocks + concatenated tile
    vmem_limit = int(min(64 << 20, max(est + (8 << 20), 32 << 20)))

    out = pl.pallas_call(
        _make_kernel(gridsize, lam0, delta, operand_dtype),
        out_shape=jax.ShapeDtypeStruct((Np, outdim), jnp.float32),
        grid_spec=pltpu.PrefetchScalarGridSpec(
            num_scalar_prefetch=0,
            grid=(Np // TN,),
            in_specs=[
                pl.BlockSpec((TN, inputdim), lambda n: (n, 0)),
                # Constant block index -> weights/bias are fetched once.
                pl.BlockSpec((K, outdim), lambda n: (0, 0)),
                pl.BlockSpec((1, outdim), lambda n: (0, 0)),
            ],
            out_specs=pl.BlockSpec((TN, outdim), lambda n: (n, 0)),
        ),
        compiler_params=pltpu.CompilerParams(
            dimension_semantics=("parallel",),
            vmem_limit_bytes=vmem_limit),
    )(x2, W, b)

    return out[:N].reshape(outshape)


def reference_forward(x, gridsize_param, laplacecoeffs, bias=None):
    """Pure-JAX transcription of the PyTorch forward (for correctness check)."""
    gridsize = int(max(1, round(float(gridsize_param))))
    inputdim = laplacecoeffs.shape[2]
    outdim = laplacecoeffs.shape[1]
    outshape = x.shape[:-1] + (outdim,)
    x2 = x.reshape(-1, inputdim)
    lambdas = jnp.linspace(0.1, 1.0, gridsize).reshape(1, 1, 1, gridsize)
    xr = x2.reshape(x2.shape[0], 1, x2.shape[1], 1)
    e_neg = jnp.exp(-lambdas * xr)
    e_pos = jnp.exp(lambdas * xr)
    y = jnp.sum(e_neg * laplacecoeffs[0:1, :, :, :gridsize], axis=(-2, -1))
    y = y + jnp.sum(e_pos * laplacecoeffs[1:2, :, :, :gridsize], axis=(-2, -1))
    if bias is not None:
        y = y + bias
    return y.reshape(outshape)


if __name__ == "__main__":
    inputdim, outdim, gridsize = 16, 32, 8

    key = jax.random.PRNGKey(0)
    kx, kw, kx2 = jax.random.split(key, 3)

    # Deterministic xavier_uniform init for laplacecoeffs (2, O, I, G):
    # fan_in = O*I*G, fan_out = 2*I*G, bound = sqrt(6/(fan_in+fan_out)).
    fan_in = outdim * inputdim * gridsize
    fan_out = 2 * inputdim * gridsize
    bound = float(np.sqrt(6.0 / (fan_in + fan_out)))
    laplacecoeffs = jax.random.uniform(
        kw, (2, outdim, inputdim, gridsize),
        minval=-bound, maxval=bound, dtype=jnp.float32)
    bias = jnp.zeros((1, outdim), dtype=jnp.float32)
    gridsize_param = jnp.float32(gridsize)

    # Case 1: small input (batch=2, seq=8, inputdim=16).
    x = jax.random.normal(kx, (2, 8, inputdim), dtype=jnp.float32)
    y_ref = reference_forward(x, gridsize_param, laplacecoeffs, bias)

    y_f32 = naive_laplace_kan_forward(
        x, gridsize_param, laplacecoeffs, bias, operand_dtype=jnp.float32)
    y_f32 = jax.block_until_ready(y_f32)
    assert y_f32.shape == (2, 8, outdim)
    np.testing.assert_allclose(np.asarray(y_f32), np.asarray(y_ref),
                               rtol=2e-4, atol=2e-4)

    y_bf16 = naive_laplace_kan_forward(
        x, gridsize_param, laplacecoeffs, bias)          # default bf16 operands
    y_bf16 = jax.block_until_ready(y_bf16)
    np.testing.assert_allclose(np.asarray(y_bf16), np.asarray(y_ref),
                               rtol=5e-2, atol=5e-2)

    # Case 2: ragged N exercises row padding + a multi-step parallel grid.
    x_big = jax.random.normal(kx2, (3, 70, inputdim), dtype=jnp.float32)
    y2_ref = reference_forward(x_big, gridsize_param, laplacecoeffs, bias)
    y2 = naive_laplace_kan_forward(
        x_big, gridsize_param, laplacecoeffs, bias,
        block_rows=128, operand_dtype=jnp.float32)
    y2 = jax.block_until_ready(y2)
    assert y2.shape == (3, 70, outdim)
    np.testing.assert_allclose(np.asarray(y2), np.asarray(y2_ref),
                               rtol=2e-4, atol=2e-4)

    # Case 3: no-bias path (addbias=False equivalent).
    y3 = naive_laplace_kan_forward(
        x, gridsize_param, laplacecoeffs, None, operand_dtype=jnp.float32)
    y3 = jax.block_until_ready(y3)
    y3_ref = reference_forward(x, gridsize_param, laplacecoeffs, None)
    np.testing.assert_allclose(np.asarray(y3), np.asarray(y3_ref),
                               rtol=2e-4, atol=2e-4)

    print("KERNEL_OK")
</pallas_src>

<mosaic_0001>
module attributes {stable_mosaic.version = 11 : i64} {
  func.func @kernel(%arg0: i32, %arg1: memref<16x16xf32, #tpu.memory_space<vmem>>, %arg2: memref<256x32xf32, #tpu.memory_space<vmem>>, %arg3: memref<1x32xf32, #tpu.memory_space<vmem>>, %arg4: memref<16x32xf32, #tpu.memory_space<vmem>>) attributes {dimension_semantics = [#tpu.dimension_semantics<parallel>], iteration_bounds = array<i64: 1>, scalar_prefetch = 0 : i64, scratch_operands = 0 : i64, tpu.core_type = #tpu.core_type<tc>, window_params = [{transform_indices = @transform_0, window_bounds = array<i64: 16, 16>}, {pipeline_mode = #tpu.pipeline_mode<synchronous>, transform_indices = @transform_1, window_bounds = array<i64: 256, 32>}, {pipeline_mode = #tpu.pipeline_mode<synchronous>, transform_indices = @transform_2, window_bounds = array<i64: 1, 32>}, {transform_indices = @transform_3, window_bounds = array<i64: 16, 32>}]} {
    %c0 = arith.constant 0 : index
    %c0_0 = arith.constant 0 : index
    %0 = vector.load %arg1[%c0, %c0_0] : memref<16x16xf32, #tpu.memory_space<vmem>>, vector<16x16xf32>
    %cst = arith.constant -1.000000e-01 : f32
    %1 = vector.broadcast %cst : f32 to vector<16x16xf32>
    %2 = arith.mulf %1, %0 : vector<16x16xf32>
    %3 = math.exp %2 : vector<16x16xf32>
    %cst_1 = arith.constant 1.000000e-01 : f32
    %4 = vector.broadcast %cst_1 : f32 to vector<16x16xf32>
    %5 = arith.mulf %4, %0 : vector<16x16xf32>
    %6 = math.exp %5 : vector<16x16xf32>
    %cst_2 = arith.constant -0.128571436 : f32
    %7 = vector.broadcast %cst_2 : f32 to vector<16x16xf32>
    %8 = arith.mulf %7, %0 : vector<16x16xf32>
    %9 = math.exp %8 : vector<16x16xf32>
    %cst_3 = arith.constant 0.128571436 : f32
    %10 = vector.broadcast %cst_3 : f32 to vector<16x16xf32>
    %11 = arith.mulf %10, %0 : vector<16x16xf32>
    %12 = math.exp %11 : vector<16x16xf32>
    %13 = arith.mulf %3, %9 : vector<16x16xf32>
    %14 = arith.mulf %6, %12 : vector<16x16xf32>
    %15 = arith.mulf %13, %9 : vector<16x16xf32>
    %16 = arith.mulf %14, %12 : vector<16x16xf32>
    %17 = arith.mulf %15, %9 : vector<16x16xf32>
    %18 = arith.mulf %16, %12 : vector<16x16xf32>
    %19 = arith.mulf %17, %9 : vector<16x16xf32>
    %20 = arith.mulf %18, %12 : vector<16x16xf32>
    %21 = arith.mulf %19, %9 : vector<16x16xf32>
    %22 = arith.mulf %20, %12 : vector<16x16xf32>
    %23 = arith.mulf %21, %9 : vector<16x16xf32>
    %24 = arith.mulf %22, %12 : vector<16x16xf32>
    %25 = arith.mulf %23, %9 : vector<16x16xf32>
    %26 = arith.mulf %24, %12 : vector<16x16xf32>
    %27 = tpu.concatenate %3, %13, %15, %17, %19, %21, %23, %25, %6, %14, %16, %18, %20, %22, %24, %26 in 1 : vector<16x16xf32>, vector<16x16xf32>, vector<16x16xf32>, vector<16x16xf32>, vector<16x16xf32>, vector<16x16xf32>, vector<16x16xf32>, vector<16x16xf32>, vector<16x16xf32>, vector<16x16xf32>, vector<16x16xf32>, vector<16x16xf32>, vector<16x16xf32>, vector<16x16xf32>, vector<16x16xf32>, vector<16x16xf32> -> vector<16x256xf32>
    %c0_4 = arith.constant 0 : index
    %c0_5 = arith.constant 0 : index
    %28 = vector.load %arg2[%c0_4, %c0_5] : memref<256x32xf32, #tpu.memory_space<vmem>>, vector<256x32xf32>
    %cst_6 = arith.constant dense<0.000000e+00> : vector<16x32xf32>
    %29 = tpu.matmul %27, %28, %cst_6 {dimension_numbers = #tpu.dot_dimension_numbers<[1], [0], [0], [1], [0, 0, 1, 1], [], []>} : vector<16x256xf32>, vector<256x32xf32>, vector<16x32xf32> -> vector<16x32xf32>
    %c0_7 = arith.constant 0 : index
    %c0_8 = arith.constant 0 : index
    %30 = vector.load %arg3[%c0_7, %c0_8] : memref<1x32xf32, #tpu.memory_space<vmem>>, vector<1x32xf32>
    %31 = vector.broadcast %30 : vector<1x32xf32> to vector<16x32xf32>
    %32 = arith.addf %29, %31 : vector<16x32xf32>
    %c0_9 = arith.constant 0 : index
    %c0_10 = arith.constant 0 : index
    %33 = vector.load %arg4[%c0_9, %c0_10] : memref<16x32xf32, #tpu.memory_space<vmem>>, vector<16x32xf32>
    tpu.vector_store %arg4[%c0_9, %c0_10], %32 {strides = array<i32>} : memref<16x32xf32, #tpu.memory_space<vmem>>, vector<16x32xf32>,
    return
  }
  func.func @transform_0(%arg0: i32) -> (i32, i32) {
    %c0_i32 = arith.constant 0 : i32
    %c0_i32_0 = arith.constant 0 : i32
    return %arg0, %c0_i32 : i32, i32
  }
  func.func @transform_1(%arg0: i32) -> (i32, i32) {
    %c0_i32 = arith.constant 0 : i32
    %c0_i32_0 = arith.constant 0 : i32
    %c0_i32_1 = arith.constant 0 : i32
    return %c0_i32, %c0_i32_0 : i32, i32
  }
  func.func @transform_2(%arg0: i32) -> (i32, i32) {
    %c0_i32 = arith.constant 0 : i32
    %c0_i32_0 = arith.constant 0 : i32
    %c0_i32_1 = arith.constant 0 : i32
    return %c0_i32, %c0_i32_0 : i32, i32
  }
  func.func @transform_3(%arg0: i32) -> (i32, i32) {
    %c0_i32 = arith.constant 0 : i32
    %c0_i32_0 = arith.constant 0 : i32
    return %arg0, %c0_i32 : i32, i32
  }
}

</mosaic_0001>

<llo_original>
// kernel: tpu_custom_call.1
$region0: #{tpu_custom_call.1}
  #allocation0 [shape = 'u32[]', space=smem, size = 0x4, offset = 0x4, fixed_abs, tag = 'smem constant byte address 0x4 - core index']
  #allocation1 [shape = 'u32[144,128]{1,0:T(1,128)}', space=vmem, size = 0x12000, scoped, tag = 'internal scratch']
  %s0 = inlined_call_operand.vmem [shape: f32[16,16], index: 0, kind: input, shape index: {}]
  %s1 = inlined_call_operand.vmem [shape: f32[256,32], index: 1, kind: input, shape index: {}]
  %s2 = inlined_call_operand.vmem [shape: f32[1,32], index: 2, kind: input, shape index: {}]
  %s3 = inlined_call_operand.hbm [shape: f32[16,32], index: 3, kind: output, shape index: {}]
  %s4 = sld [smem:[#allocation0]]
  $region22: #{tpu_custom_call.1} parent=0
    _
  %s6 = ssub.s32 1, %s4
  %s7 = scalar_select 0, %s6, %s4
  $region1: #{tpu_custom_call.1} parent=0
    #allocation2 [shape = 'u8[8192]{0}', space=vmem, size = 0x2000, scoped, tag = 'output window, operand 0, single buffered']
    #allocation3 [shape = 's32[1]{0}', space=sflag, size = 0x4, scoped, tag = 'scoped memory for tpu_custom_call.1']
    %8 = vsyncpa [#allocation3], 0
    // Predicated region
    $region2: #{tpu_custom_call.1} parent=1 // pred_check
      _
    $region3: #{tpu_custom_call.1} parent=1 // pred_check_branch
      %10 = sbr.rel (0) target = $region5
    $region4: #{tpu_custom_call.1} parent=1 // pred_region
      _
    $region5: #{tpu_custom_call.1} parent=1 // pred_fallthru
      _
    // Predicated region
    $region6: #{tpu_custom_call.1} parent=1 // pred_check
      _
    $region7: #{tpu_custom_call.1} parent=1 // pred_check_branch
      %12 = sbr.rel (0) target = $region9
    $region8: #{tpu_custom_call.1} parent=1 // pred_region
      _
    $region9: #{tpu_custom_call.1} parent=1 // pred_fallthru
      _
    // Predicated region
    $region10: #{tpu_custom_call.1} parent=1 // pred_check
      _
    $region11: #{tpu_custom_call.1} parent=1 // pred_check_branch
      %14 = sbr.rel (0) target = $region13
    $region12: #{tpu_custom_call.1} parent=1 // pred_region
      _
    $region13: #{tpu_custom_call.1} parent=1 // pred_fallthru
      _
    %v15 = vld [vmem:[%s0] sm:$0xff]
    %v16 = vld [vmem:[%s0 + $0x8] sm:$0xff]
    %v17 = vmul.f32 %v15, -0.1
    %v18 = vmul.f32 %v16, -0.1
    %v19 = vmul.f32 %v17, 1.442695
    %v20 = vpow.pop %v19
    %v21 = vmul.f32 %v18, 1.442695
    %v22 = vpow.pop %v21
    %v23 = vmul.f32 %v15, 0.1
    %v24 = vmul.f32 %v16, 0.1
    %v25 = vmul.f32 %v23, 1.442695
    %v26 = vpow.pop %v25
    %v27 = vmul.f32 %v24, 1.442695
    %v28 = vpow.pop %v27
    %v29 = vmul.f32 %v15, -0.12857144
    %v30 = vmul.f32 %v16, -0.12857144
    %v31 = vmul.f32 %v29, 1.442695
    %v32 = vpow.pop %v31
    %v33 = vmul.f32 %v30, 1.442695
    %v34 = vpow.pop %v33
    %v35 = vmul.f32 %v15, 0.12857144
    %v36 = vmul.f32 %v16, 0.12857144
    %v37 = vmul.f32 %v35, 1.442695
    %v38 = vpow.pop %v37
    %v39 = vmul.f32 %v36, 1.442695
    %v40 = vpow.pop %v39
    %v41 = vmul.f32 %v20, %v32
    %v42 = vmul.f32 %v22, %v34
    %v43 = vmul.f32 %v26, %v38
    %v44 = vmul.f32 %v28, %v40
    %v45 = vmul.f32 %v41, %v32
    %v46 = vmul.f32 %v42, %v34
    %v47 = vmul.f32 %v43, %v38
    %v48 = vmul.f32 %v44, %v40
    %v49 = vmul.f32 %v45, %v32
    %v50 = vmul.f32 %v46, %v34
    %v51 = vmul.f32 %v47, %v38
    %v52 = vmul.f32 %v48, %v40
    %v53 = vmul.f32 %v49, %v32
    %v54 = vmul.f32 %v50, %v34
    %v55 = vmul.f32 %v51, %v38
    %v56 = vmul.f32 %v52, %v40
    %v57 = vmul.f32 %v53, %v32
    %v58 = vmul.f32 %v54, %v34
    %v59 = vmul.f32 %v55, %v38
    %v60 = vmul.f32 %v56, %v40
    %v61 = vmul.f32 %v57, %v32
    %v62 = vmul.f32 %v58, %v34
    %v63 = vmul.f32 %v59, %v38
    %v64 = vmul.f32 %v60, %v40
    %v65 = vmul.f32 %v61, %v32
    %v66 = vmul.f32 %v62, %v34
    %v67 = vmul.f32 %v63, %v38
    %v68 = vmul.f32 %v64, %v40
    %71 = vrot.lane.b32.xlu0 %v41, 16
    %v72 = vpop.permute.xlu0 %71
    %73 = vrot.lane.b32.xlu0 %v42, 16
    %v74 = vpop.permute.xlu0 %73
    %79 = vrot.lane.b32.xlu0 %v45, 32
    %v80 = vpop.permute.xlu0 %79
    %81 = vrot.lane.b32.xlu0 %v46, 32
    %v82 = vpop.permute.xlu0 %81
    %87 = vrot.lane.b32.xlu0 %v49, 48
    %v88 = vpop.permute.xlu0 %87
    %89 = vrot.lane.b32.xlu0 %v50, 48
    %v90 = vpop.permute.xlu0 %89
    %95 = vrot.lane.b32.xlu0 %v53, 64
    %v96 = vpop.permute.xlu0 %95
    %97 = vrot.lane.b32.xlu0 %v54, 64
    %v98 = vpop.permute.xlu0 %97
    %103 = vrot.lane.b32.xlu0 %v57, 80
    %v104 = vpop.permute.xlu0 %103
    %105 = vrot.lane.b32.xlu0 %v58, 80
    %v106 = vpop.permute.xlu0 %105
    %111 = vrot.lane.b32.xlu0 %v61, 96
    %v112 = vpop.permute.xlu0 %111
    %113 = vrot.lane.b32.xlu0 %v62, 96
    %v114 = vpop.permute.xlu0 %113
    %119 = vrot.lane.b32.xlu0 %v65, 112
    %v120 = vpop.permute.xlu0 %119
    %121 = vrot.lane.b32.xlu0 %v66, 112
    %v122 = vpop.permute.xlu0 %121
    %127 = vrot.lane.b32.xlu0 %v43, 16
    %v128 = vpop.permute.xlu0 %127
    %129 = vrot.lane.b32.xlu0 %v44, 16
    %v130 = vpop.permute.xlu0 %129
    %135 = vrot.lane.b32.xlu0 %v47, 32
    %v136 = vpop.permute.xlu0 %135
    %137 = vrot.lane.b32.xlu0 %v48, 32
    %v138 = vpop.permute.xlu0 %137
    %143 = vrot.lane.b32.xlu0 %v51, 48
    %v144 = vpop.permute.xlu0 %143
    %145 = vrot.lane.b32.xlu0 %v52, 48
    %v146 = vpop.permute.xlu0 %145
    %151 = vrot.lane.b32.xlu0 %v55, 64
    %v152 = vpop.permute.xlu0 %151
    %153 = vrot.lane.b32.xlu0 %v56, 64
    %v154 = vpop.permute.xlu0 %153
    %159 = vrot.lane.b32.xlu0 %v59, 80
    %v160 = vpop.permute.xlu0 %159
    %161 = vrot.lane.b32.xlu0 %v60, 80
    %v162 = vpop.permute.xlu0 %161
    %167 = vrot.lane.b32.xlu0 %v63, 96
    %v168 = vpop.permute.xlu0 %167
    %169 = vrot.lane.b32.xlu0 %v64, 96
    %v170 = vpop.permute.xlu0 %169
    %175 = vrot.lane.b32.xlu0 %v67, 112
    %v176 = vpop.permute.xlu0 %175
    %177 = vrot.lane.b32.xlu0 %v68, 112
    %v178 = vpop.permute.xlu0 %177
    %vm181 = vcmask 130048
    %v182 = vsel %vm181, %v20, %v72
    %v183 = vsel %vm181, %v22, %v74
    %vm184 = vcmask 261120
    %v185 = vsel %vm184, %v182, %v80
    %v186 = vsel %vm184, %v183, %v82
    %vm187 = vcmask 392192
    %v188 = vsel %vm187, %v185, %v88
    %v189 = vsel %vm187, %v186, %v90
    %vm190 = vcmask 523264
    %v191 = vsel %vm190, %v188, %v96
    %v192 = vsel %vm190, %v189, %v98
    %vm193 = vcmask 654336
    %v194 = vsel %vm193, %v191, %v104
    %v195 = vsel %vm193, %v192, %v106
    %vm196 = vcmask 785408
    %v197 = vsel %vm196, %v194, %v112
    %v198 = vsel %vm196, %v195, %v114
    %vm199 = vcmask 916480
    %v200 = vsel %vm199, %v197, %v120
    %v201 = vsel %vm199, %v198, %v122
    %v202 = vsel %vm181, %v26, %v128
    %v203 = vsel %vm181, %v28, %v130
    %v204 = vsel %vm184, %v202, %v136
    %v205 = vsel %vm184, %v203, %v138
    %v206 = vsel %vm187, %v204, %v144
    %v207 = vsel %vm187, %v205, %v146
    %v208 = vsel %vm190, %v206, %v152
    %v209 = vsel %vm190, %v207, %v154
    %v210 = vsel %vm193, %v208, %v160
    %v211 = vsel %vm193, %v209, %v162
    %v212 = vsel %vm196, %v210, %v168
    %v213 = vsel %vm196, %v211, %v170
    %v214 = vsel %vm199, %v212, %v176
    %v215 = vsel %vm199, %v213, %v178
    %v216 = vld [vmem:[%s1] sm:$0xff]
    %v217 = vld [vmem:[%s1 + $0x8] sm:$0xff]
    %v218 = vld [vmem:[%s1 + $0x10] sm:$0xff]
    %v219 = vld [vmem:[%s1 + $0x18] sm:$0xff]
    %v220 = vld [vmem:[%s1 + $0x20] sm:$0xff]
    %v221 = vld [vmem:[%s1 + $0x28] sm:$0xff]
    %v222 = vld [vmem:[%s1 + $0x30] sm:$0xff]
    %v223 = vld [vmem:[%s1 + $0x38] sm:$0xff]
    %v224 = vld [vmem:[%s1 + $0x40] sm:$0xff]
    %v225 = vld [vmem:[%s1 + $0x48] sm:$0xff]
    %v226 = vld [vmem:[%s1 + $0x50] sm:$0xff]
    %v227 = vld [vmem:[%s1 + $0x58] sm:$0xff]
    %v228 = vld [vmem:[%s1 + $0x60] sm:$0xff]
    %v229 = vld [vmem:[%s1 + $0x68] sm:$0xff]
    %v230 = vld [vmem:[%s1 + $0x70] sm:$0xff]
    %v231 = vld [vmem:[%s1 + $0x78] sm:$0xff]
    %v232 = vld [vmem:[%s1 + $0x80] sm:$0xff]
    %v233 = vld [vmem:[%s1 + $0x88] sm:$0xff]
    %v234 = vld [vmem:[%s1 + $0x90] sm:$0xff]
    %v235 = vld [vmem:[%s1 + $0x98] sm:$0xff]
    %v236 = vld [vmem:[%s1 + $0xa0] sm:$0xff]
    %v237 = vld [vmem:[%s1 + $0xa8] sm:$0xff]
    %v238 = vld [vmem:[%s1 + $0xb0] sm:$0xff]
    %v239 = vld [vmem:[%s1 + $0xb8] sm:$0xff]
    %v240 = vld [vmem:[%s1 + $0xc0] sm:$0xff]
    %v241 = vld [vmem:[%s1 + $0xc8] sm:$0xff]
    %v242 = vld [vmem:[%s1 + $0xd0] sm:$0xff]
    %v243 = vld [vmem:[%s1 + $0xd8] sm:$0xff]
    %v244 = vld [vmem:[%s1 + $0xe0] sm:$0xff]
    %v245 = vld [vmem:[%s1 + $0xe8] sm:$0xff]
    %v246 = vld [vmem:[%s1 + $0xf0] sm:$0xff]
    %v247 = vld [vmem:[%s1 + $0xf8] sm:$0xff]
    %v248 = vld [vmem:[%s2] sm:$0x1]
    %v250 = vlaneseq
    %v251 = vshrl.u32 %v250, 7
    %v252 = vsub.s32 0, %v251
    %v253 = vrot.slane %v248, %v252
    %255 = vmatprep.subr.mxu0 0.0
    %256 = vmatpush1.msra.mxu0 %v216
    %257 = vmatprep.subr.mxu0 0.0
    %258 = vmatpush1.msra.mxu0 %v217
    %259 = vmatprep.subr.mxu0 0.0
    %260 = vmatpush1.msra.mxu0 %v218
    %261 = vmatprep.subr.mxu0 0.0
    %262 = vmatpush1.msra.mxu0 %v219
    %263 = vmatprep.subr.mxu0 0.0
    %264 = vmatpush1.msra.mxu0 %v220
    %265 = vmatprep.subr.mxu0 0.0
    %266 = vmatpush1.msra.mxu0 %v221
    %267 = vmatprep.subr.mxu0 0.0
    %268 = vmatpush1.msra.mxu0 %v222
    %269 = vmatprep.subr.mxu0 0.0
    %270 = vmatpush1.msra.mxu0 %v223
    %271 = vmatprep.subr.mxu0 0.0
    %272 = vmatpush1.msra.mxu0 %v224
    %273 = vmatprep.subr.mxu0 0.0
    %274 = vmatpush1.msra.mxu0 %v225
    %275 = vmatprep.subr.mxu0 0.0
    %276 = vmatpush1.msra.mxu0 %v226
    %277 = vmatprep.subr.mxu0 0.0
    %278 = vmatpush1.msra.mxu0 %v227
    %279 = vmatprep.subr.mxu0 0.0
    %280 = vmatpush1.msra.mxu0 %v228
    %281 = vmatprep.subr.mxu0 0.0
    %282 = vmatpush1.msra.mxu0 %v229
    %283 = vmatprep.subr.mxu0 0.0
    %284 = vmatpush1.msra.mxu0 %v230
    %285 = vmatprep.subr.mxu0 0.0
    %286 = vmatpush1.msra.mxu0 %v231
    %287 = vmatprep.subr.mxu0 0.0
    %288 = vmatpush1.msra.mxu0 %v232
    %289 = vmatprep.subr.mxu0 0.0
    %290 = vmatpush1.msra.mxu0 %v233
    %291 = vmatprep.subr.mxu0 0.0
    %292 = vmatpush1.msra.mxu0 %v234
    %293 = vmatprep.subr.mxu0 0.0
    %294 = vmatpush1.msra.mxu0 %v235
    %295 = vmatprep.subr.mxu0 0.0
    %296 = vmatpush1.msra.mxu0 %v236
    %297 = vmatprep.subr.mxu0 0.0
    %298 = vmatpush1.msra.mxu0 %v237
    %299 = vmatprep.subr.mxu0 0.0
    %300 = vmatpush1.msra.mxu0 %v238
    %301 = vmatprep.subr.mxu0 0.0
    %302 = vmatpush1.msra.mxu0 %v239
    %303 = vmatprep.subr.mxu0 0.0
    %304 = vmatpush1.msra.mxu0 %v240
    %305 = vmatprep.subr.mxu0 0.0
    %306 = vmatpush1.msra.mxu0 %v241
    %307 = vmatprep.subr.mxu0 0.0
    %308 = vmatpush1.msra.mxu0 %v242
    %309 = vmatprep.subr.mxu0 0.0
    %310 = vmatpush1.msra.mxu0 %v243
    %311 = vmatprep.subr.mxu0 0.0
    %312 = vmatpush1.msra.mxu0 %v244
    %313 = vmatprep.subr.mxu0 0.0
    %314 = vmatpush1.msra.mxu0 %v245
    %315 = vmatprep.subr.mxu0 0.0
    %316 = vmatpush1.msra.mxu0 %v246
    %317 = vmatprep.subr.mxu0 0.0
    %318 = vmatpush1.msra.mxu0 %v247
    %319 = vmatprep.mubr.f32.mxu0 %v214
    %320 = vmatmul.mubr.f32.gmra.mrb[0].mxu0 %v200
    %v321 = vpop.f32.mrb[0].mxu0
    %v322 = vadd.f32 %v253, %v321
    %v323 = vpop.f32.mrb[0].mxu0
    %324 = vmatprep.mubr.f32.mxu0 %v215
    %325 = vmatmul.mubr.f32.gmra.mrb[0].mxu0 %v201
    %v326 = vpop.f32.mrb[0].mxu0
    %v327 = vadd.f32 %v253, %v326
    %v328 = vpop.f32.mrb[0].mxu0
    %329 = vdwg.mxu0
    %330 = vst.msk [vmem:[#allocation2] sm:$0xff] %vm184, %v322
    %331 = vst.msk [vmem:[#allocation2 + $0x8] sm:$0xff] %vm184, %v327
    // Predicated region
    $region14: #{tpu_custom_call.1} parent=1 // pred_check
      _
    $region15: #{tpu_custom_call.1} parent=1 // pred_check_branch
      %333 = sbr.rel (0) target = $region17
    $region16: #{tpu_custom_call.1} parent=1 // pred_region
      %s335 = ssub.s32 256, 256
      %336 = vsyncadd [#allocation3], %s335
      %s337 = sshll.u32 [#allocation2], 4
      %s338 = int_to_ptr.vmem [resolvable:$true] %s337
      %343 = dma.vmem_to_hbm [thread:$0]  %s338, 256, %s3, [#allocation3], 128, 128, 8
    $region17: #{tpu_custom_call.1} parent=1 // pred_fallthru
      _
    // Predicated region
    $region18: #{tpu_custom_call.1} parent=1 // pred_check
      _
    $region19: #{tpu_custom_call.1} parent=1 // pred_check_branch
      %345 = sbr.rel (0) target = $region21
    $region20: #{tpu_custom_call.1} parent=1 // pred_region
      %346 = dma.done [#allocation3], 256
    $region21: #{tpu_custom_call.1} parent=1 // pred_fallthru
      _
    %347 = vsyncpa [#allocation3], 1

</llo_original>
